<compile_context>
chip_gen: v5e
topology: v5e:2x2
jax: 0.10.0
libtpu: 0.0.40
codegen_flags: <defaults>
</compile_context>

<pallas_src>
import jax
import jax.numpy as jnp
from jax.experimental import pallas as pl
from jax.experimental.pallas import tpu as pltpu

INPUT_SIZE = 4
OUTPUT_SIZE = 2


def _round_up(x, m):
    return ((x + m - 1) // m) * m


def _linear_kernel(w_ref, b_ref, x_ref, o_ref):
    # w_ref: (2, 4) f32 in SMEM (scalar reads)
    # b_ref: (2,)   f32 in SMEM (scalar reads)
    # x_ref: (4, TB) f32 in VMEM  -- batch on lanes (lane-dense)
    # o_ref: (2, TB) f32 in VMEM  -- batch on lanes (lane-dense)
    x = x_ref[...]  # (4, TB)
    for o in range(OUTPUT_SIZE):            # unrolled: 2 rows
        acc = x[0:1, :] * w_ref[o, 0]       # (1, TB) VPU multiply
        for k in range(1, INPUT_SIZE):      # unrolled: 3 more mul-adds
            acc = acc + x[k:k + 1, :] * w_ref[o, k]
        o_ref[o:o + 1, :] = acc + b_ref[o]


def rl_model_forward(state, weight, bias, *, tb=2048):
    """Pallas equivalent of RL_MODEL.forward.

    Args:
      state:  (B, 4) float32
      weight: (2, 4) float32   -- PyTorch nn.Linear convention (out, in)
      bias:   (2,)   float32
    Returns:
      actions: (B, 2) float32
    """
    B = state.shape[0]

    # Feature-major layout: batch maps to the 128-wide lane axis.
    x = state.T  # (4, B)

    # Batch tile: multiple of 128 lanes, capped at `tb` rows per grid step.
    TB = min(tb, _round_up(B, 128))
    Bp = _round_up(B, TB)
    if Bp != B:
        x = jnp.pad(x, ((0, 0), (0, Bp - B)))

    grid = (Bp // TB,)

    out_t = pl.pallas_call(
        _linear_kernel,
        out_shape=jax.ShapeDtypeStruct((OUTPUT_SIZE, Bp), state.dtype),
        grid=grid,
        in_specs=[
            # 8 + 2 scalars live in SMEM; keeps the vector-load slots for x.
            pl.BlockSpec(memory_space=pltpu.MemorySpace.SMEM),   # weight (2, 4)
            pl.BlockSpec(memory_space=pltpu.MemorySpace.SMEM),   # bias   (2,)
            pl.BlockSpec((INPUT_SIZE, TB), lambda i: (0, i)),    # x tile
        ],
        out_specs=pl.BlockSpec((OUTPUT_SIZE, TB), lambda i: (0, i)),
        compiler_params=pltpu.CompilerParams(
            dimension_semantics=("parallel",)),  # megacore-shardable on v7x
    )(weight, bias, x)

    return out_t[:, :B].T  # back to (B, 2), matching nn.Linear output


def init_params(key):
    """Deterministic init matching nn.Linear default: U(-1/sqrt(in), 1/sqrt(in))."""
    kw, kb = jax.random.split(key)
    bound = 1.0 / jnp.sqrt(jnp.float32(INPUT_SIZE))
    weight = jax.random.uniform(
        kw, (OUTPUT_SIZE, INPUT_SIZE), jnp.float32, -bound, bound)
    bias = jax.random.uniform(
        kb, (OUTPUT_SIZE,), jnp.float32, -bound, bound)
    return weight, bias


if __name__ == "__main__":
    key = jax.random.PRNGKey(0)
    k_state, k_params = jax.random.split(key)
    weight, bias = init_params(k_params)

    ok = True
    # Small CartPole-style batch, plus a batch big enough to exercise
    # multi-step grid tiling + padding (2 grid steps at TB=2048).
    for batch in (8, 3000):
        state = jax.random.normal(k_state, (batch, INPUT_SIZE), jnp.float32)
        actions = rl_model_forward(state, weight, bias)
        jax.block_until_ready(actions)

        ref = state @ weight.T + bias
        ok &= actions.shape == (batch, OUTPUT_SIZE)
        ok &= bool(jnp.allclose(actions, ref, atol=1e-5, rtol=1e-5))

    assert ok
    print("KERNEL_OK")
</pallas_src>

<mosaic_0001>
module attributes {stable_mosaic.version = 11 : i64} {
  func.func @_linear_kernel(%arg0: i32, %arg1: memref<2x4xf32, #tpu.memory_space<smem>>, %arg2: memref<2xf32, #tpu.memory_space<smem>>, %arg3: memref<4x128xf32, #tpu.memory_space<vmem>>, %arg4: memref<2x128xf32, #tpu.memory_space<vmem>>) attributes {dimension_semantics = [#tpu.dimension_semantics<parallel>], iteration_bounds = array<i64: 1>, scalar_prefetch = 0 : i64, scratch_operands = 0 : i64, tpu.core_type = #tpu.core_type<tc>, window_params = [{transform_indices = @transform_0, window_bounds = array<i64: 2, 4>}, {transform_indices = @transform_1, window_bounds = array<i64: 2>}, {transform_indices = @transform_2, window_bounds = array<i64: 4, 128>}, {transform_indices = @transform_3, window_bounds = array<i64: 2, 128>}]} {
    %c0 = arith.constant 0 : index
    %c0_0 = arith.constant 0 : index
    %0 = vector.load %arg3[%c0, %c0_0] : memref<4x128xf32, #tpu.memory_space<vmem>>, vector<4x128xf32>
    %1 = vector.extract_strided_slice %0 {offsets = [0, 0], sizes = [1, 128], strides = [1, 1]} : vector<4x128xf32> to vector<1x128xf32>
    %c0_1 = arith.constant 0 : index
    %c0_2 = arith.constant 0 : index
    %2 = memref.load %arg1[%c0_1, %c0_2] : memref<2x4xf32, #tpu.memory_space<smem>>
    %3 = vector.broadcast %2 : f32 to vector<1x128xf32>
    %4 = arith.mulf %1, %3 : vector<1x128xf32>
    %5 = vector.extract_strided_slice %0 {offsets = [1, 0], sizes = [1, 128], strides = [1, 1]} : vector<4x128xf32> to vector<1x128xf32>
    %c0_3 = arith.constant 0 : index
    %c1 = arith.constant 1 : index
    %6 = memref.load %arg1[%c0_3, %c1] : memref<2x4xf32, #tpu.memory_space<smem>>
    %7 = vector.broadcast %6 : f32 to vector<1x128xf32>
    %8 = arith.mulf %5, %7 : vector<1x128xf32>
    %9 = arith.addf %4, %8 : vector<1x128xf32>
    %10 = vector.extract_strided_slice %0 {offsets = [2, 0], sizes = [1, 128], strides = [1, 1]} : vector<4x128xf32> to vector<1x128xf32>
    %c0_4 = arith.constant 0 : index
    %c2 = arith.constant 2 : index
    %11 = memref.load %arg1[%c0_4, %c2] : memref<2x4xf32, #tpu.memory_space<smem>>
    %12 = vector.broadcast %11 : f32 to vector<1x128xf32>
    %13 = arith.mulf %10, %12 : vector<1x128xf32>
    %14 = arith.addf %9, %13 : vector<1x128xf32>
    %15 = vector.extract_strided_slice %0 {offsets = [3, 0], sizes = [1, 128], strides = [1, 1]} : vector<4x128xf32> to vector<1x128xf32>
    %c0_5 = arith.constant 0 : index
    %c3 = arith.constant 3 : index
    %16 = memref.load %arg1[%c0_5, %c3] : memref<2x4xf32, #tpu.memory_space<smem>>
    %17 = vector.broadcast %16 : f32 to vector<1x128xf32>
    %18 = arith.mulf %15, %17 : vector<1x128xf32>
    %19 = arith.addf %14, %18 : vector<1x128xf32>
    %c0_6 = arith.constant 0 : index
    %20 = memref.load %arg2[%c0_6] : memref<2xf32, #tpu.memory_space<smem>>
    %21 = vector.broadcast %20 : f32 to vector<1x128xf32>
    %22 = arith.addf %19, %21 : vector<1x128xf32>
    %c0_7 = arith.constant 0 : index
    %c0_8 = arith.constant 0 : index
    %23 = vector.load %arg4[%c0_7, %c0_8] : memref<2x128xf32, #tpu.memory_space<vmem>>, vector<1x128xf32>
    tpu.vector_store %arg4[%c0_7, %c0_8], %22 {strides = array<i32>} : memref<2x128xf32, #tpu.memory_space<vmem>>, vector<1x128xf32>,
    %24 = vector.extract_strided_slice %0 {offsets = [0, 0], sizes = [1, 128], strides = [1, 1]} : vector<4x128xf32> to vector<1x128xf32>
    %c1_9 = arith.constant 1 : index
    %c0_10 = arith.constant 0 : index
    %25 = memref.load %arg1[%c1_9, %c0_10] : memref<2x4xf32, #tpu.memory_space<smem>>
    %26 = vector.broadcast %25 : f32 to vector<1x128xf32>
    %27 = arith.mulf %24, %26 : vector<1x128xf32>
    %28 = vector.extract_strided_slice %0 {offsets = [1, 0], sizes = [1, 128], strides = [1, 1]} : vector<4x128xf32> to vector<1x128xf32>
    %c1_11 = arith.constant 1 : index
    %c1_12 = arith.constant 1 : index
    %29 = memref.load %arg1[%c1_11, %c1_12] : memref<2x4xf32, #tpu.memory_space<smem>>
    %30 = vector.broadcast %29 : f32 to vector<1x128xf32>
    %31 = arith.mulf %28, %30 : vector<1x128xf32>
    %32 = arith.addf %27, %31 : vector<1x128xf32>
    %33 = vector.extract_strided_slice %0 {offsets = [2, 0], sizes = [1, 128], strides = [1, 1]} : vector<4x128xf32> to vector<1x128xf32>
    %c1_13 = arith.constant 1 : index
    %c2_14 = arith.constant 2 : index
    %34 = memref.load %arg1[%c1_13, %c2_14] : memref<2x4xf32, #tpu.memory_space<smem>>
    %35 = vector.broadcast %34 : f32 to vector<1x128xf32>
    %36 = arith.mulf %33, %35 : vector<1x128xf32>
    %37 = arith.addf %32, %36 : vector<1x128xf32>
    %38 = vector.extract_strided_slice %0 {offsets = [3, 0], sizes = [1, 128], strides = [1, 1]} : vector<4x128xf32> to vector<1x128xf32>
    %c1_15 = arith.constant 1 : index
    %c3_16 = arith.constant 3 : index
    %39 = memref.load %arg1[%c1_15, %c3_16] : memref<2x4xf32, #tpu.memory_space<smem>>
    %40 = vector.broadcast %39 : f32 to vector<1x128xf32>
    %41 = arith.mulf %38, %40 : vector<1x128xf32>
    %42 = arith.addf %37, %41 : vector<1x128xf32>
    %c1_17 = arith.constant 1 : index
    %43 = memref.load %arg2[%c1_17] : memref<2xf32, #tpu.memory_space<smem>>
    %44 = vector.broadcast %43 : f32 to vector<1x128xf32>
    %45 = arith.addf %42, %44 : vector<1x128xf32>
    %c1_18 = arith.constant 1 : index
    %c0_19 = arith.constant 0 : index
    %46 = vector.load %arg4[%c1_18, %c0_19] : memref<2x128xf32, #tpu.memory_space<vmem>>, vector<1x128xf32>
    tpu.vector_store %arg4[%c1_18, %c0_19], %45 {strides = array<i32>} : memref<2x128xf32, #tpu.memory_space<vmem>>, vector<1x128xf32>,
    return
  }
  func.func @transform_0(%arg0: i32) -> (i32, i32) {
    %c0_i32 = arith.constant 0 : i32
    %c0_i32_0 = arith.constant 0 : i32
    %c0_i32_1 = arith.constant 0 : i32
    return %c0_i32, %c0_i32_0 : i32, i32
  }
  func.func @transform_1(%arg0: i32) -> i32 {
    %c0_i32 = arith.constant 0 : i32
    %c0_i32_0 = arith.constant 0 : i32
    return %c0_i32 : i32
  }
  func.func @transform_2(%arg0: i32) -> (i32, i32) {
    %c0_i32 = arith.constant 0 : i32
    %c0_i32_0 = arith.constant 0 : i32
    return %c0_i32, %arg0 : i32, i32
  }
  func.func @transform_3(%arg0: i32) -> (i32, i32) {
    %c0_i32 = arith.constant 0 : i32
    %c0_i32_0 = arith.constant 0 : i32
    return %c0_i32, %arg0 : i32, i32
  }
}

</mosaic_0001>

<llo_original>
// kernel: tpu_custom_call.1
$region0: #{tpu_custom_call.1}
  #allocation0 [shape = 'u32[]', space=smem, size = 0x4, offset = 0x4, fixed_abs, tag = 'smem constant byte address 0x4 - core index']
  #allocation1 [shape = 'u32[72,128]{1,0:T(1,128)}', space=vmem, size = 0x9000, scoped, tag = 'internal scratch']
  %s0 = inlined_call_operand.hbm [shape: f32[2,4], index: 0, kind: input, shape index: {}]
  %s1 = inlined_call_operand.hbm [shape: f32[2], index: 1, kind: input, shape index: {}]
  %s2 = inlined_call_operand.hbm [shape: f32[4,128], index: 2, kind: input, shape index: {}]
  %s3 = inlined_call_operand.hbm [shape: f32[2,128], index: 3, kind: output, shape index: {}]
  %s4 = sld [smem:[#allocation0]]
  $region34: #{tpu_custom_call.1} parent=0
    _
  %s6 = ssub.s32 1, %s4
  %s7 = scalar_select 0, %s6, %s4
  $region1: #{tpu_custom_call.1} parent=0
    #allocation2 [shape = 'u8[1024]{0}', space=smem, size = 0x400, scoped, tag = 'input window, operand 0, single buffered']
    #allocation3 [shape = 's32[1]{0}', space=sflag, size = 0x4, scoped, tag = 'scoped memory for tpu_custom_call.1']
    #allocation4 [shape = 's32[1]{0}', space=sflag, size = 0x4, scoped, tag = 'scoped memory for tpu_custom_call.1']
    #allocation5 [shape = 's32[1]{0}', space=sflag, size = 0x4, scoped, tag = 'scoped memory for tpu_custom_call.1']
    #allocation6 [shape = 'u8[512]{0}', space=smem, size = 0x200, scoped, tag = 'input window, operand 1, single buffered']
    #allocation7 [shape = 's32[1]{0}', space=sflag, size = 0x4, scoped, tag = 'scoped memory for tpu_custom_call.1']
    #allocation8 [shape = 'u8[2048]{0}', space=vmem, size = 0x800, scoped, tag = 'input window, operand 2, single buffered']
    #allocation9 [shape = 'u8[1024]{0}', space=vmem, size = 0x400, scoped, tag = 'output window, operand 0, single buffered']
    %8 = vsyncpa [#allocation5], 0
    %9 = vsyncpa [#allocation7], 0
    %10 = vsyncpa [#allocation3], 0
    %11 = vsyncpa [#allocation4], 0
    // Predicated region
    $region2: #{tpu_custom_call.1} parent=1 // pred_check
      _
    $region3: #{tpu_custom_call.1} parent=1 // pred_check_branch
      %13 = sbr.rel (0) target = $region5
    $region4: #{tpu_custom_call.1} parent=1 // pred_region
      %15 = vsyncadd [#allocation5], 0
      %s17 = sshll.u32 %s0, 4
      %s18 = int_to_ptr.hbm [resolvable:$true] %s17
      %20 = dma.hbm_to_smem %s18, 32, [#allocation2], [#allocation5]
    $region5: #{tpu_custom_call.1} parent=1 // pred_fallthru
      _
    // Predicated region
    $region6: #{tpu_custom_call.1} parent=1 // pred_check
      _
    $region7: #{tpu_custom_call.1} parent=1 // pred_check_branch
      %22 = sbr.rel (0) target = $region9
    $region8: #{tpu_custom_call.1} parent=1 // pred_region
      %24 = vsyncadd [#allocation7], 0
      %s26 = sshll.u32 %s1, 4
      %s27 = int_to_ptr.hbm [resolvable:$true] %s26
      %29 = dma.hbm_to_smem %s27, 16, [#allocation6], [#allocation7]
    $region9: #{tpu_custom_call.1} parent=1 // pred_fallthru
      _
    // Predicated region
    $region10: #{tpu_custom_call.1} parent=1 // pred_check
      _
    $region11: #{tpu_custom_call.1} parent=1 // pred_check_branch
      %31 = sbr.rel (0) target = $region13
    $region12: #{tpu_custom_call.1} parent=1 // pred_region
      %33 = vsyncadd [#allocation3], 0
      %s35 = sshll.u32 %s2, 4
      %s36 = int_to_ptr.hbm [resolvable:$true] %s35
      %s37 = sshll.u32 [#allocation8], 4
      %s38 = int_to_ptr.vmem [resolvable:$true] %s37
      %40 = dma.hbm_to_vmem [thread:$0]  %s36, 64, %s38, [#allocation3]
    $region13: #{tpu_custom_call.1} parent=1 // pred_fallthru
      _
    // Predicated region
    $region14: #{tpu_custom_call.1} parent=1 // pred_check
      _
    $region15: #{tpu_custom_call.1} parent=1 // pred_check_branch
      %42 = sbr.rel (0) target = $region17
    $region16: #{tpu_custom_call.1} parent=1 // pred_region
      %44 = dma.done [#allocation5], 32
    $region17: #{tpu_custom_call.1} parent=1 // pred_fallthru
      _
    // Predicated region
    $region18: #{tpu_custom_call.1} parent=1 // pred_check
      _
    $region19: #{tpu_custom_call.1} parent=1 // pred_check_branch
      %46 = sbr.rel (0) target = $region21
    $region20: #{tpu_custom_call.1} parent=1 // pred_region
      %48 = dma.done [#allocation7], 16
    $region21: #{tpu_custom_call.1} parent=1 // pred_fallthru
      _
    // Predicated region
    $region22: #{tpu_custom_call.1} parent=1 // pred_check
      _
    $region23: #{tpu_custom_call.1} parent=1 // pred_check_branch
      %50 = sbr.rel (0) target = $region25
    $region24: #{tpu_custom_call.1} parent=1 // pred_region
      %52 = dma.done [#allocation3], 64
    $region25: #{tpu_custom_call.1} parent=1 // pred_fallthru
      _
    %53 = sfence
    %v54 = vld [vmem:[#allocation8] sm:$0xf]
    %s55 = sld [smem:[#allocation2]]
    %v56 = vstv %s55
    %v57 = vmul.f32 %v54, %v56
    %s58 = sld [smem:[#allocation2 + $0x1]]
    %v59 = vstv %s58
    %v60 = vmul.f32 %v54, %v59
    %v62 = vrot.slane %v60, 1
    %v64 = vadd.f32 %v57, %v62
    %s65 = sld [smem:[#allocation2 + $0x2]]
    %v66 = vstv %s65
    %v67 = vmul.f32 %v54, %v66
    %v69 = vrot.slane %v67, 2
    %v71 = vadd.f32 %v64, %v69
    %s72 = sld [smem:[#allocation2 + $0x3]]
    %v73 = vstv %s72
    %v74 = vmul.f32 %v54, %v73
    %v76 = vrot.slane %v74, 3
    %v78 = vadd.f32 %v71, %v76
    %s79 = sld [smem:[#allocation6]]
    %v80 = vstv %s79
    %v81 = vadd.f32 %v78, %v80
    %82 = vst [vmem:[#allocation9] sm:$0x1] %v81
    %s83 = sld [smem:[#allocation2 + $0x80]]
    %v84 = vstv %s83
    %v85 = vmul.f32 %v54, %v84
    %s86 = sld [smem:[#allocation2 + $0x81]]
    %v87 = vstv %s86
    %v88 = vmul.f32 %v54, %v87
    %v90 = vrot.slane %v88, 1
    %v92 = vadd.f32 %v85, %v90
    %s93 = sld [smem:[#allocation2 + $0x82]]
    %v94 = vstv %s93
    %v95 = vmul.f32 %v54, %v94
    %v97 = vrot.slane %v95, 2
    %v99 = vadd.f32 %v92, %v97
    %s100 = sld [smem:[#allocation2 + $0x83]]
    %v101 = vstv %s100
    %v102 = vmul.f32 %v54, %v101
    %v104 = vrot.slane %v102, 3
    %v106 = vadd.f32 %v99, %v104
    %s107 = sld [smem:[#allocation6 + $0x1]]
    %v108 = vstv %s107
    %v109 = vadd.f32 %v106, %v108
    %110 = vst [vmem:[#allocation9 + $0x1] sm:$0x1] %v109
    // Predicated region
    $region26: #{tpu_custom_call.1} parent=1 // pred_check
      _
    $region27: #{tpu_custom_call.1} parent=1 // pred_check_branch
      %112 = sbr.rel (0) target = $region29
    $region28: #{tpu_custom_call.1} parent=1 // pred_region
      %114 = vsyncadd [#allocation4], 0
      %s116 = sshll.u32 [#allocation9], 4
      %s117 = int_to_ptr.vmem [resolvable:$true] %s116
      %s118 = sshll.u32 %s3, 4
      %s119 = int_to_ptr.hbm [resolvable:$true] %s118
      %121 = dma.vmem_to_hbm [thread:$0]  %s117, 32, %s119, [#allocation4]
    $region29: #{tpu_custom_call.1} parent=1 // pred_fallthru
      _
    // Predicated region
    $region30: #{tpu_custom_call.1} parent=1 // pred_check
      _
    $region31: #{tpu_custom_call.1} parent=1 // pred_check_branch
      %123 = sbr.rel (0) target = $region33
    $region32: #{tpu_custom_call.1} parent=1 // pred_region
      %125 = dma.done [#allocation4], 32
    $region33: #{tpu_custom_call.1} parent=1 // pred_fallthru
      _
    %126 = vsyncpa [#allocation3], 1
    %127 = vsyncpa [#allocation4], 1
    %128 = vsyncpa [#allocation5], 1
    %129 = vsyncpa [#allocation7], 1

</llo_original>
